<compile_context>
chip_gen: v7x
topology: tpu7x:2x2x1
jax: 0.10.0
libtpu: 0.0.40
codegen_flags: <defaults>
</compile_context>

<pallas_src>
import functools

import jax
import jax.numpy as jnp
from jax import lax
from jax.experimental import pallas as pl
from jax.experimental.pallas import tpu as pltpu


def _round_up(x, m):
    return ((x + m - 1) // m) * m


def _vmem_budget_and_limit():
    """Per-generation (tile budget, vmem_limit_bytes).

    v5e/v6e have 128 MiB VMEM per TensorCore -> use a big tile budget so
    large-C tiles keep TB well above the 8/16-row floor.  v7x has 64 MiB per
    TC (and unknown/failed queries fall back to the conservative v7x values).
    """
    cap = None
    try:
        cap = getattr(pltpu.get_tpu_info(), "vmem_capacity_bytes", None)
    except Exception:
        cap = None
    if cap is not None and cap >= 100 * 1024 * 1024:     # v5e / v6e
        return 40 * 1024 * 1024, 80 * 1024 * 1024
    return 20 * 1024 * 1024, 44 * 1024 * 1024            # v7x / unknown


def _distill_kl_kernel(t_ref, ys_ref, yt_ref, out_ref, *, batch, block_b):
    """Partial KL sum for one batch tile.

    t_ref  : SMEM (1,)   f32   temperature (scalar prefetch)
    ys_ref : VMEM (TB, C)      student logits tile
    yt_ref : VMEM (TB, C)      teacher logits tile
    out_ref: SMEM (1, 1) f32   sum_{b in tile, c} p_t * (log p_t - log q_s)
    """
    inv_T = 1.0 / t_ref[0]
    # TODO(synk): on v6e/v7x the scale/shift could stay in packed bf16 on the
    # VPU (upcasting only for the reductions) if this ever becomes VALU-bound.
    ys = ys_ref[...].astype(jnp.float32) * inv_T
    yt = yt_ref[...].astype(jnp.float32) * inv_T

    # Student: full log-sum-exp (max shift included).
    max_s = jnp.max(ys, axis=1, keepdims=True)
    lse_s = max_s + jnp.log(jnp.sum(jnp.exp(ys - max_s), axis=1, keepdims=True))

    # Teacher: softmax numerator / denominator and full log-sum-exp.
    max_t = jnp.max(yt, axis=1, keepdims=True)
    e_t = jnp.exp(yt - max_t)
    denom = jnp.sum(e_t, axis=1, keepdims=True)
    lse_t = max_t + jnp.log(denom)

    # p_t * (log p_t - log q_s) = (e_t / denom) * ((yt - ys) + (lse_s - lse_t))
    # Factoring 1/denom out of the class sum avoids materializing p_t.
    diff = (yt - ys) + (lse_s - lse_t)
    row_kl = jnp.sum(e_t * diff, axis=1, keepdims=True)            # (TB, 1)
    # Reciprocal is (TB,1)-shaped -> negligible next to the 2*TB*C exps, so
    # keep it exact (approx=True would only matter if this vector were the
    # binding EUP cost, which it is not).
    row_kl = row_kl * pl.reciprocal(denom, approx=False)

    if batch % block_b:
        # Ragged last tile: rows beyond `batch` hold stale VMEM data (possibly
        # NaN after the math above); select-with-where keeps them out of the
        # sum without propagating NaN.  Static no-op when B % TB == 0.
        row = lax.broadcasted_iota(jnp.int32, row_kl.shape, 0)
        valid = (row + pl.program_id(0) * block_b) < batch
        row_kl = jnp.where(valid, row_kl, 0.0)

    out_ref[0, 0] = jnp.sum(row_kl)


def distill_kl(y_s, y_t, temp, *, max_block_b=None):
    """Pallas DistillKL.forward(y_s, y_t, temp): batchmean KL * T^2.

    `max_block_b` is a test-only cap on the batch tile (forces multi-tile /
    ragged paths at small shapes); leave None in production.
    """
    assert y_s.shape == y_t.shape and y_s.ndim == 2
    B, C = y_s.shape
    itemsize = jnp.dtype(y_s.dtype).itemsize

    # Lane-padded width of the VMEM tiles (layout only; the DMA block itself
    # uses the true C, so no extra HBM traffic for non-128-multiple C).
    C_lanes = _round_up(C, 128)
    row_align = 8 * (4 // itemsize)          # f32 -> 8, bf16 -> 16, 8-bit -> 32

    vmem_budget, vmem_limit = _vmem_budget_and_limit()

    # Per-row VMEM cost: 2 inputs x 2 pipeline buffers (input dtype) plus
    # ~6 full-tile f32 temporaries (upcasts, shifted copies, e_t, diff, prod).
    bytes_per_row = 2 * 2 * C_lanes * itemsize + 6 * C_lanes * 4
    tb_vmem = (vmem_budget // bytes_per_row) // row_align * row_align
    TB = max(tb_vmem, row_align)
    TB = min(TB, 8192)                       # ~2-4 MiB DMA/step at small C
    if max_block_b is not None:
        TB = min(TB, max(8, (max_block_b // 8) * 8))
    if TB >= B:
        TB = B                               # single full-batch tile (full-dim
                                             # block is always a legal shape)
    num_tiles = pl.cdiv(B, TB)
    # TODO(synk): vocab-scale C (a single (row_align, C) tile + temporaries
    # exceeding the budget) needs a second grid axis over classes with
    # streaming/online logsumexp accumulators.

    t = jnp.asarray(temp, dtype=jnp.float32).reshape((1,))
    kernel = functools.partial(_distill_kl_kernel, batch=B, block_b=TB)

    partials = pl.pallas_call(
        kernel,
        out_shape=jax.ShapeDtypeStruct((num_tiles, 1), jnp.float32),
        grid_spec=pltpu.PrefetchScalarGridSpec(
            num_scalar_prefetch=1,
            grid=(num_tiles,),
            in_specs=[
                # Full-C block dim: legal for any C (== array dim); Mosaic
                # masks the lane padding inside reductions, so no jnp.pad and
                # no sentinel masking pass.
                # If xprof ever shows exposed DMA on short steps, sweep
                # pipeline_mode=pl.Buffered(3) here (and grow the budget).
                pl.BlockSpec((TB, C), lambda i, t_ref: (i, 0)),
                pl.BlockSpec((TB, C), lambda i, t_ref: (i, 0)),
            ],
            out_specs=pl.BlockSpec(
                (1, 1), lambda i, t_ref: (i, 0),
                memory_space=pltpu.MemorySpace.SMEM),
        ),
        compiler_params=pltpu.CompilerParams(
            dimension_semantics=("parallel",),   # megacore sharding on v7x
            vmem_limit_bytes=vmem_limit,
        ),
    )(t, y_s, y_t)

    T = t[0]
    return jnp.sum(partials) * (T * T) / jnp.float32(B)


def _reference(y_s, y_t, temp):
    # Pure-JAX reference matching the PyTorch semantics.
    T = jnp.float32(temp)
    ys = y_s.astype(jnp.float32) / T
    yt = y_t.astype(jnp.float32) / T
    log_q = jax.nn.log_softmax(ys, axis=1)
    p_t = jax.nn.softmax(yt, axis=1)
    log_p = jax.nn.log_softmax(yt, axis=1)
    return jnp.sum(p_t * (log_p - log_q)) / y_s.shape[0] * T * T


if __name__ == "__main__":
    key = jax.random.PRNGKey(0)
    k1, k2, k3, k4 = jax.random.split(key, 4)

    # Small classification-style logits: 8 samples, 32 classes.
    B, C = 8, 32
    y_s = jax.random.normal(k1, (B, C), dtype=jnp.float32)
    y_t = jax.random.normal(k2, (B, C), dtype=jnp.float32)
    temp = jnp.float32(4.0)

    loss = distill_kl(y_s, y_t, temp)
    jax.block_until_ready(loss)
    ref = _reference(y_s, y_t, temp)
    assert jnp.allclose(loss, ref, rtol=1e-4, atol=1e-5), (loss, ref)

    # bf16 logits path (halves HBM traffic; kernel upcasts internally).
    loss_bf16 = distill_kl(y_s.astype(jnp.bfloat16), y_t.astype(jnp.bfloat16), temp)
    jax.block_until_ready(loss_bf16)
    ref_bf16 = _reference(y_s.astype(jnp.bfloat16), y_t.astype(jnp.bfloat16), temp)
    assert jnp.allclose(loss_bf16, ref_bf16, rtol=1e-3, atol=1e-3), (loss_bf16, ref_bf16)

    # Multi-tile grid with a ragged last tile (exercises the in-kernel row mask
    # that replaced the wrapper-side jnp.pad).
    B2, C2 = 40, 32
    y_s2 = jax.random.normal(k3, (B2, C2), dtype=jnp.float32)
    y_t2 = jax.random.normal(k4, (B2, C2), dtype=jnp.float32)
    loss2 = distill_kl(y_s2, y_t2, temp, max_block_b=16)
    jax.block_until_ready(loss2)
    ref2 = _reference(y_s2, y_t2, temp)
    assert jnp.allclose(loss2, ref2, rtol=1e-4, atol=1e-5), (loss2, ref2)

    print("KERNEL_OK")
</pallas_src>

<mosaic_0001>
module attributes {stable_mosaic.version = 11 : i64} {
  func.func @_distill_kl_kernel(%arg0: i32, %arg1: memref<1xf32, #tpu.memory_space<smem>>, %arg2: memref<8x32xf32, #tpu.memory_space<vmem>>, %arg3: memref<8x32xf32, #tpu.memory_space<vmem>>, %arg4: memref<1x1xf32, #tpu.memory_space<smem>>) attributes {dimension_semantics = [#tpu.dimension_semantics<parallel>], iteration_bounds = array<i64: 1>, scalar_prefetch = 1 : i64, scratch_operands = 0 : i64, tpu.core_type = #tpu.core_type<tc>, window_params = [{transform_indices = @transform_0, window_bounds = array<i64: 8, 32>}, {transform_indices = @transform_1, window_bounds = array<i64: 8, 32>}, {transform_indices = @transform_2, window_bounds = array<i64: 1, 1>}]} {
    %c0 = arith.constant 0 : index
    %0 = memref.load %arg1[%c0] : memref<1xf32, #tpu.memory_space<smem>>
    %cst = arith.constant 1.000000e+00 : f32
    %1 = arith.divf %cst, %0 : f32
    %c0_0 = arith.constant 0 : index
    %c0_1 = arith.constant 0 : index
    %2 = vector.load %arg2[%c0_0, %c0_1] : memref<8x32xf32, #tpu.memory_space<vmem>>, vector<8x32xf32>
    %3 = vector.broadcast %1 : f32 to vector<8x32xf32>
    %4 = arith.mulf %2, %3 : vector<8x32xf32>
    %c0_2 = arith.constant 0 : index
    %c0_3 = arith.constant 0 : index
    %5 = vector.load %arg3[%c0_2, %c0_3] : memref<8x32xf32, #tpu.memory_space<vmem>>, vector<8x32xf32>
    %6 = vector.broadcast %1 : f32 to vector<8x32xf32>
    %7 = arith.mulf %5, %6 : vector<8x32xf32>
    %cst_4 = arith.constant dense<0xFF800000> : vector<8xf32>
    %8 = vector.multi_reduction <maximumf>, %4, %cst_4 [1] : vector<8x32xf32> to vector<8xf32>
    %9 = vector.shape_cast %8 : vector<8xf32> to vector<8x1xf32>
    %10 = vector.broadcast %9 : vector<8x1xf32> to vector<8x32xf32>
    %11 = arith.subf %4, %10 : vector<8x32xf32>
    %12 = math.exp %11 : vector<8x32xf32>
    %cst_5 = arith.constant dense<0.000000e+00> : vector<8xf32>
    %13 = vector.multi_reduction <add>, %12, %cst_5 [1] : vector<8x32xf32> to vector<8xf32>
    %14 = vector.shape_cast %13 : vector<8xf32> to vector<8x1xf32>
    %15 = math.log %14 : vector<8x1xf32>
    %16 = arith.addf %9, %15 : vector<8x1xf32>
    %cst_6 = arith.constant dense<0xFF800000> : vector<8xf32>
    %17 = vector.multi_reduction <maximumf>, %7, %cst_6 [1] : vector<8x32xf32> to vector<8xf32>
    %18 = vector.shape_cast %17 : vector<8xf32> to vector<8x1xf32>
    %19 = vector.broadcast %18 : vector<8x1xf32> to vector<8x32xf32>
    %20 = arith.subf %7, %19 : vector<8x32xf32>
    %21 = math.exp %20 : vector<8x32xf32>
    %cst_7 = arith.constant dense<0.000000e+00> : vector<8xf32>
    %22 = vector.multi_reduction <add>, %21, %cst_7 [1] : vector<8x32xf32> to vector<8xf32>
    %23 = vector.shape_cast %22 : vector<8xf32> to vector<8x1xf32>
    %24 = math.log %23 : vector<8x1xf32>
    %25 = arith.addf %18, %24 : vector<8x1xf32>
    %26 = arith.subf %7, %4 : vector<8x32xf32>
    %27 = arith.subf %16, %25 : vector<8x1xf32>
    %28 = vector.broadcast %27 : vector<8x1xf32> to vector<8x32xf32>
    %29 = arith.addf %26, %28 : vector<8x32xf32>
    %30 = arith.mulf %21, %29 : vector<8x32xf32>
    %cst_8 = arith.constant dense<0.000000e+00> : vector<8xf32>
    %31 = vector.multi_reduction <add>, %30, %cst_8 [1] : vector<8x32xf32> to vector<8xf32>
    %32 = vector.shape_cast %31 : vector<8xf32> to vector<8x1xf32>
    %33 = tpu.reciprocal %23 : vector<8x1xf32> -> vector<8x1xf32>
    %34 = arith.mulf %32, %33 : vector<8x1xf32>
    %35 = vector.shape_cast %34 : vector<8x1xf32> to vector<1x8x1xf32>
    %cst_9 = arith.constant dense<0.000000e+00> : vector<1xf32>
    %36 = vector.multi_reduction <add>, %35, %cst_9 [1, 2] : vector<1x8x1xf32> to vector<1xf32>
    %37 = vector.shape_cast %36 : vector<1xf32> to vector<1x1x1xf32>
    %38 = vector.extract %37[0, 0, 0] : f32 from vector<1x1x1xf32>
    %c0_10 = arith.constant 0 : index
    %c0_11 = arith.constant 0 : index
    %39 = memref.load %arg4[%c0_10, %c0_11] : memref<1x1xf32, #tpu.memory_space<smem>>
    memref.store %38, %arg4[%c0_10, %c0_11] : memref<1x1xf32, #tpu.memory_space<smem>>
    return
  }
  func.func @transform_0(%arg0: i32, %arg1: memref<1xf32, #tpu.memory_space<smem>>) -> (i32, i32) {
    %c0_i32 = arith.constant 0 : i32
    %c0_i32_0 = arith.constant 0 : i32
    return %arg0, %c0_i32 : i32, i32
  }
  func.func @transform_1(%arg0: i32, %arg1: memref<1xf32, #tpu.memory_space<smem>>) -> (i32, i32) {
    %c0_i32 = arith.constant 0 : i32
    %c0_i32_0 = arith.constant 0 : i32
    return %arg0, %c0_i32 : i32, i32
  }
  func.func @transform_2(%arg0: i32, %arg1: memref<1xf32, #tpu.memory_space<smem>>) -> (i32, i32) {
    %c0_i32 = arith.constant 0 : i32
    %c0_i32_0 = arith.constant 0 : i32
    return %arg0, %c0_i32 : i32, i32
  }
}

</mosaic_0001>

<llo_original>
// kernel: tpu_custom_call.1
$region0: #{tpu_custom_call.1}
  #allocation0 [shape = 'u32[]', space=smem, size = 0x4, offset = 0x4, fixed_abs, tag = 'smem constant byte address 0x4 - core index']
  #allocation1 [shape = 'u32[144,128]{1,0:T(1,128)}', space=vmem, size = 0x12000, scoped, tag = 'internal scratch']
  #allocation2 [shape = 's32[1]{0}', space=sflag, size = 0x4, scoped, tag = 'scoped memory for tpu_custom_call.1']
  #allocation3 [shape = 'f32[1]{0:T(128)S(6)}', space=smem, size = 0x200, scoped, tag = 'prefetched SMEM operand 0']
  %s0 = inlined_call_operand.<no memory space> [shape: f32[1], index: 0, kind: input, shape index: {}]
  %s1 = inlined_call_operand.hbm [shape: f32[8,32], index: 1, kind: input, shape index: {}]
  %s2 = inlined_call_operand.hbm [shape: f32[8,32], index: 2, kind: input, shape index: {}]
  %s3 = inlined_call_operand.hbm [shape: f32[1,1], index: 3, kind: output, shape index: {}]
  %s4 = sld [smem:[#allocation0]]
  $region26: #{tpu_custom_call.1} parent=0
    _
  %s6 = ssub.s32 1, %s4
  %s7 = scalar_select 0, %s6, %s4
  %8 = sst [smem:[#allocation3]] %s0
  $region1: #{tpu_custom_call.1} parent=0
    #allocation4 [shape = 'u8[4096]{0}', space=vmem, size = 0x1000, scoped, tag = 'input window, operand 1, single buffered']
    #allocation5 [shape = 's32[1]{0}', space=sflag, size = 0x4, scoped, tag = 'scoped memory for tpu_custom_call.1']
    #allocation6 [shape = 's32[1]{0}', space=sflag, size = 0x4, scoped, tag = 'scoped memory for tpu_custom_call.1']
    #allocation7 [shape = 'u8[4096]{0}', space=vmem, size = 0x1000, scoped, tag = 'input window, operand 2, single buffered']
    #allocation8 [shape = 's32[1]{0}', space=sflag, size = 0x4, scoped, tag = 'scoped memory for tpu_custom_call.1']
    #allocation9 [shape = 'u8[512]{0}', space=smem, size = 0x200, scoped, tag = 'output window, operand 0, single buffered']
    %9 = vsyncpa [#allocation5], 0
    %10 = vsyncpa [#allocation8], 0
    %11 = vsyncpa [#allocation6], 0
    // Predicated region
    $region2: #{tpu_custom_call.1} parent=1 // pred_check
      _
    $region3: #{tpu_custom_call.1} parent=1 // pred_check_branch
      %13 = sbr.rel (0) target = $region5
    $region4: #{tpu_custom_call.1} parent=1 // pred_region
      %s15 = ssub.s32 128, 128
      %16 = vsyncadd [#allocation5], %s15
      %s18 = sshll.u32 [#allocation4], 4
      %s19 = int_to_ptr.vmem [resolvable:$true] %s18
      %21 = dma.hbm_to_vmem [thread:$0]  %s1, 128, %s19, [#allocation5]
    $region5: #{tpu_custom_call.1} parent=1 // pred_fallthru
      _
    // Predicated region
    $region6: #{tpu_custom_call.1} parent=1 // pred_check
      _
    $region7: #{tpu_custom_call.1} parent=1 // pred_check_branch
      %23 = sbr.rel (0) target = $region9
    $region8: #{tpu_custom_call.1} parent=1 // pred_region
      %s25 = ssub.s32 128, 128
      %26 = vsyncadd [#allocation8], %s25
      %s28 = sshll.u32 [#allocation7], 4
      %s29 = int_to_ptr.vmem [resolvable:$true] %s28
      %31 = dma.hbm_to_vmem [thread:$0]  %s2, 128, %s29, [#allocation8]
    $region9: #{tpu_custom_call.1} parent=1 // pred_fallthru
      _
    // Predicated region
    $region10: #{tpu_custom_call.1} parent=1 // pred_check
      _
    $region11: #{tpu_custom_call.1} parent=1 // pred_check_branch
      %33 = sbr.rel (0) target = $region13
    $region12: #{tpu_custom_call.1} parent=1 // pred_region
      %34 = dma.done [#allocation5], 128
    $region13: #{tpu_custom_call.1} parent=1 // pred_fallthru
      _
    // Predicated region
    $region14: #{tpu_custom_call.1} parent=1 // pred_check
      _
    $region15: #{tpu_custom_call.1} parent=1 // pred_check_branch
      %36 = sbr.rel (0) target = $region17
    $region16: #{tpu_custom_call.1} parent=1 // pred_region
      %37 = dma.done [#allocation8], 128
    $region17: #{tpu_custom_call.1} parent=1 // pred_fallthru
      _
    %s38 = sld [smem:[#allocation3]]
    %v39 = vstv %s38
    %v40 = vrcp.pop %v39
    %s41 = vtos %v40
    %v42 = vld [vmem:[#allocation4] sm:$0xff]
    %v43 = vstv %s41
    %v44 = vmul.f32 %v42, %v43
    %v45 = vld [vmem:[#allocation7] sm:$0xff]
    %v46 = vmul.f32 %v45, %v43
    %vm47 = vcmask 261120
    %v48 = vsel %vm47, %v44, -inf
    %49 = vmax.xlane.f32.xlu0 %v48
    %v50 = vpop.xlane.xlu0 %49
    %v51 = vsub.f32 %v44, %v50
    %v52 = vmul.f32 %v51, 1.442695
    %v53 = vpow.pop %v52
    %v54 = vsel %vm47, %v53, 0.0
    %55 = vadd.xlane.f32.xlu0 %v54
    %v56 = vpop.xlane.xlu0 %55
    %v57 = vlog2.pop %v56
    %v58 = vmul.f32 %v57, 0.6931472
    %v59 = vadd.f32 %v50, %v58
    %v60 = vsel %vm47, %v46, -inf
    %61 = vmax.xlane.f32.xlu0 %v60
    %v62 = vpop.xlane.xlu0 %61
    %v63 = vsub.f32 %v46, %v62
    %v64 = vmul.f32 %v63, 1.442695
    %v65 = vpow.pop %v64
    %v66 = vsel %vm47, %v65, 0.0
    %67 = vadd.xlane.f32.xlu0 %v66
    %v68 = vpop.xlane.xlu0 %67
    %v69 = vlog2.pop %v68
    %v70 = vmul.f32 %v69, 0.6931472
    %v71 = vadd.f32 %v62, %v70
    %v72 = vsub.f32 %v46, %v44
    %v73 = vsub.f32 %v59, %v71
    %v74 = vadd.f32 %v72, %v73
    %v75 = vmul.f32 %v65, %v74
    %v76 = vsel %vm47, %v75, 0.0
    %77 = vadd.xlane.f32.xlu0 %v76
    %v78 = vpop.xlane.xlu0 %77
    %v79 = vrcp.pop %v68
    %v80 = vmul.f32 %v78, %v79
    %vm81 = vcmask 7168
    %v82 = vsel %vm81, %v80, 0.0
    %83 = vadd.xlane.f32.xlu0 %v82
    %v84 = vpop.xlane.xlu0 %83
    %v85 = vrot.slane %v84, 4
    %v86 = vadd.f32 %v84, %v85
    %v87 = vrot.slane %v86, 2
    %v88 = vadd.f32 %v86, %v87
    %v89 = vrot.slane %v88, 1
    %v90 = vadd.f32 %v88, %v89
    %s91 = vtos %v90
    %s92 = scalar_lea.smem [#allocation9], 0
    %93 = sst [smem:[%s92]] %s91
    // Predicated region
    $region18: #{tpu_custom_call.1} parent=1 // pred_check
      _
    $region19: #{tpu_custom_call.1} parent=1 // pred_check_branch
      %95 = sbr.rel (0) target = $region21
    $region20: #{tpu_custom_call.1} parent=1 // pred_region
      %s97 = ssub.s32 16, 16
      %98 = vsyncadd [#allocation6], %s97
      %101 = dma.smem_to_hbm [#allocation9], 16, %s3, [#allocation6]
    $region21: #{tpu_custom_call.1} parent=1 // pred_fallthru
      _
    // Predicated region
    $region22: #{tpu_custom_call.1} parent=1 // pred_check
      _
    $region23: #{tpu_custom_call.1} parent=1 // pred_check_branch
      %103 = sbr.rel (0) target = $region25
    $region24: #{tpu_custom_call.1} parent=1 // pred_region
      %104 = dma.done [#allocation6], 16
    $region25: #{tpu_custom_call.1} parent=1 // pred_fallthru
      _
    %105 = sfence
    %106 = vsyncpa [#allocation5], 1
    %107 = vsyncpa [#allocation8], 1
    %108 = vsyncpa [#allocation6], 1

</llo_original>
